<compile_context>
chip_gen: v7x
topology: tpu7x:2x2x1
jax: 0.10.0
libtpu: 0.0.40
codegen_flags: <defaults>
</compile_context>

<pallas_src>
import functools

import jax
import jax.numpy as jnp
from jax.experimental import pallas as pl
from jax.experimental.pallas import tpu as pltpu

LANE = 128        # lane width (last dim)
SUBLANE = 8       # sublane width (second-to-last dim)
MAX_BATCH_TILE = 256


def _round_up(n: int, m: int) -> int:
    return ((n + m - 1) // m) * m


def _cdiv(a: int, b: int) -> int:
    return -(-a // b)


def _fnn_kernel(*refs, num_layers: int, out_pads: tuple):
    """refs = (x_ref, w0_ref, ..., w{N-1}_ref, bias_table_ref, o_ref).

    Whole FNN fused: chained bf16 MXU matmuls (f32 accumulate) + f32 VPU bias-add/ReLU,
    intermediates never leave vregs/VMEM.
    """
    x_ref = refs[0]
    w_refs = refs[1:1 + num_layers]
    b_ref = refs[1 + num_layers]          # (num_layers, max_out_pad) f32
    o_ref = refs[-1]

    h = x_ref[...].astype(jnp.float32)
    for i in range(num_layers):
        dpad = out_pads[i]
        w = w_refs[i][...]                # bf16 (k_i, dpad)
        b = b_ref[i:i + 1, 0:dpad]        # f32 (1, dpad), static lane-aligned slice
        h = jnp.dot(h.astype(jnp.bfloat16), w, preferred_element_type=jnp.float32) + b
        if i < num_layers - 1:
            h = jnp.maximum(h, 0.0)
    o_ref[...] = h.astype(o_ref.dtype)


def init_fnn_params(dims, key):
    """Parameters in PyTorch nn.Linear layout: W (out, in), b (out,)."""
    params = []
    for i in range(len(dims) - 1):
        key, kw, kb = jax.random.split(key, 3)
        fan_in = dims[i]
        bound = 1.0 / (fan_in ** 0.5)     # same range as PyTorch default Linear init
        w = jax.random.uniform(kw, (dims[i + 1], dims[i]), jnp.float32, -bound, bound)
        b = jax.random.uniform(kb, (dims[i + 1],), jnp.float32, -bound, bound)
        params.append((w, b))
    return params


def pack_fnn_params(params):
    """One-time packing.

    * W transposed to (in, out) and cast to bf16; output dims padded to 128 (lane-dense MXU
      tiles / unmasked stores).  The first layer's K is only padded to a sublane multiple so
      x usually needs no feature padding at all.
    * All biases consolidated into a single (num_layers, max_out_pad) f32 table.
    """
    num_layers = len(params)
    weights, out_pads = [], []
    for li, (w, _) in enumerate(params):
        dout, din = w.shape
        k = _round_up(din, SUBLANE) if li == 0 else _round_up(din, LANE)
        dpad = _round_up(dout, LANE)
        wt = jnp.zeros((k, dpad), jnp.bfloat16).at[:din, :dout].set(w.T.astype(jnp.bfloat16))
        weights.append(wt)
        out_pads.append(dpad)

    max_out = max(out_pads)
    biases = jnp.zeros((num_layers, max_out), jnp.float32)
    for li, (_, b) in enumerate(params):
        biases = biases.at[li, :b.shape[0]].set(b.astype(jnp.float32))

    return {
        "weights": weights,
        "biases": biases,
        "out_pads": tuple(out_pads),
        "in_dim": params[0][0].shape[1],
        "out_dim": params[-1][0].shape[0],
    }


def fnn_forward(x, packed):
    """Fused FNN forward: single pallas_call over all layers, batch tiled on a parallel grid."""
    weights = packed["weights"]
    biases = packed["biases"]
    out_pads = packed["out_pads"]
    in_dim = packed["in_dim"]
    out_dim = packed["out_dim"]
    num_layers = len(weights)

    B, din = x.shape
    assert din == in_dim
    k0 = weights[0].shape[0]              # first-layer K (= round_up(din, 8))
    dout_pad_last = out_pads[-1]

    # Batch: pad only to a sublane multiple; guarantee >= 2 tiles when B > 8 so both v7x
    # TensorCores get work; partial last block is handled by masked stores.
    b_pad = _round_up(B, SUBLANE)
    if b_pad <= SUBLANE:
        tm = b_pad
    else:
        tm = min(MAX_BATCH_TILE, _round_up(_cdiv(b_pad, 2), SUBLANE))
    grid_m = _cdiv(b_pad, tm)

    # Skip the extra HBM pad pass entirely when no padding is actually needed.
    if (b_pad != B) or (k0 != din):
        x_in = jnp.zeros((b_pad, k0), x.dtype).at[:B, :din].set(x)
    else:
        x_in = x

    # VMEM budget: resident bf16 weights (single-buffered) + f32 bias table + double-buffered
    # x/out tiles + live f32/bf16 intermediates, with 2x headroom, capped for v7x (64 MiB).
    max_w = max((k0,) + out_pads)
    resident_bytes = sum(int(w.size) * 2 for w in weights) + int(biases.size) * 4
    tile_bytes = 2 * tm * k0 * 4 + 2 * tm * dout_pad_last * 4
    live_bytes = 2 * tm * max_w * (4 + 2)
    vmem_limit = int(min(max((resident_bytes + tile_bytes + live_bytes) * 2,
                             32 * 1024 * 1024), 56 * 1024 * 1024))

    # TODO(synk): for hidden widths too large to keep every weight matrix resident (~>4k wide),
    # stream (K, tn) weight blocks over a second grid axis instead of the resident-weight path.
    if resident_bytes > 48 * 1024 * 1024:
        raise NotImplementedError("FNN too wide for resident-weight kernel; needs weight streaming.")

    kernel = functools.partial(_fnn_kernel, num_layers=num_layers, out_pads=out_pads)

    def build(single_buffer_weights: bool):
        resident = {"pipeline_mode": pl.Buffered(1)} if single_buffer_weights else {}
        in_specs = [pl.BlockSpec((tm, k0), lambda i: (i, 0))]
        for wt in weights:
            # Constant index_map: weights stay resident in VMEM across all batch tiles.
            in_specs.append(pl.BlockSpec(wt.shape, lambda i: (0, 0), **resident))
        in_specs.append(pl.BlockSpec(biases.shape, lambda i: (0, 0), **resident))
        return pl.pallas_call(
            kernel,
            out_shape=jax.ShapeDtypeStruct((b_pad, dout_pad_last), x.dtype),
            grid=(grid_m,),
            in_specs=in_specs,
            out_specs=pl.BlockSpec((tm, dout_pad_last), lambda i: (i, 0)),
            compiler_params=pltpu.CompilerParams(
                dimension_semantics=("parallel",),   # batch tiles shard across TCs on v7x
                vmem_limit_bytes=vmem_limit,
            ),
        )

    try:
        out_pad = build(True)(x_in, *weights, biases)
    except Exception:
        # Fallback if this jax build rejects pipeline_mode=pl.Buffered(1) (default buffering).
        out_pad = build(False)(x_in, *weights, biases)

    # Un-pad outside the kernel (kernel output stays lane-dense / unmasked stores).
    return out_pad[:B, :out_dim]


def fnn_reference(x, params):
    n = len(params)
    for i, (w, b) in enumerate(params):
        x = x @ w.T + b
        if i < n - 1:
            x = jnp.maximum(x, 0.0)
    return x


if __name__ == "__main__":
    key = jax.random.PRNGKey(0)
    dims = [32, 64, 48, 16]   # FNN(dims): Linear(32,64)+ReLU, Linear(64,48)+ReLU, Linear(48,16)

    key, kp = jax.random.split(key)
    params = init_fnn_params(dims, kp)
    packed = pack_fnn_params(params)      # one-time transpose + bf16 cast + pad + bias table

    # batch=8: no padding, single tile.  batch=20: batch pad to 24 + partial last grid block.
    for batch in (8, 20):
        key, kx = jax.random.split(key)
        x = jax.random.normal(kx, (batch, dims[0]), jnp.float32)

        out = jax.block_until_ready(fnn_forward(x, packed))
        ref = fnn_reference(x, params)

        assert out.shape == (batch, dims[-1])
        # bf16 weights/activations on the MXU (f32 accumulate) vs f32 reference -> loose tol.
        assert jnp.allclose(out, ref, atol=5e-2, rtol=5e-2), float(jnp.max(jnp.abs(out - ref)))

    print("KERNEL_OK")
</pallas_src>

<mosaic_0001>
module attributes {stable_mosaic.version = 11 : i64} {
  func.func @_fnn_kernel(%arg0: i32, %arg1: memref<8x32xf32, #tpu.memory_space<vmem>>, %arg2: memref<32x128xbf16, #tpu.memory_space<vmem>>, %arg3: memref<128x128xbf16, #tpu.memory_space<vmem>>, %arg4: memref<128x128xbf16, #tpu.memory_space<vmem>>, %arg5: memref<3x128xf32, #tpu.memory_space<vmem>>, %arg6: memref<8x128xf32, #tpu.memory_space<vmem>>) attributes {dimension_semantics = [#tpu.dimension_semantics<parallel>], iteration_bounds = array<i64: 1>, scalar_prefetch = 0 : i64, scratch_operands = 0 : i64, tpu.core_type = #tpu.core_type<tc>, window_params = [{transform_indices = @transform_0, window_bounds = array<i64: 8, 32>}, {pipeline_mode = #tpu.pipeline_mode<synchronous>, transform_indices = @transform_1, window_bounds = array<i64: 32, 128>}, {pipeline_mode = #tpu.pipeline_mode<synchronous>, transform_indices = @transform_2, window_bounds = array<i64: 128, 128>}, {pipeline_mode = #tpu.pipeline_mode<synchronous>, transform_indices = @transform_3, window_bounds = array<i64: 128, 128>}, {pipeline_mode = #tpu.pipeline_mode<synchronous>, transform_indices = @transform_4, window_bounds = array<i64: 3, 128>}, {transform_indices = @transform_5, window_bounds = array<i64: 8, 128>}]} {
    %c0 = arith.constant 0 : index
    %c0_0 = arith.constant 0 : index
    %0 = vector.load %arg1[%c0, %c0_0] : memref<8x32xf32, #tpu.memory_space<vmem>>, vector<8x32xf32>
    %c0_1 = arith.constant 0 : index
    %c0_2 = arith.constant 0 : index
    %1 = vector.load %arg2[%c0_1, %c0_2] : memref<32x128xbf16, #tpu.memory_space<vmem>>, vector<32x128xbf16>
    %c0_3 = arith.constant 0 : index
    %c0_4 = arith.constant 0 : index
    %2 = vector.load %arg5[%c0_3, %c0_4] : memref<3x128xf32, #tpu.memory_space<vmem>>, vector<1x128xf32>
    %3 = arith.truncf %0 : vector<8x32xf32> to vector<8x32xbf16>
    %cst = arith.constant dense<0.000000e+00> : vector<8x128xf32>
    %4 = tpu.matmul %3, %1, %cst {dimension_numbers = #tpu.dot_dimension_numbers<[1], [0], [0], [1], [0, 0, 1, 1], [], []>} : vector<8x32xbf16>, vector<32x128xbf16>, vector<8x128xf32> -> vector<8x128xf32>
    %5 = vector.broadcast %2 : vector<1x128xf32> to vector<8x128xf32>
    %6 = arith.addf %4, %5 : vector<8x128xf32>
    %cst_5 = arith.constant 0.000000e+00 : f32
    %7 = vector.broadcast %cst_5 : f32 to vector<8x128xf32>
    %8 = arith.maximumf %6, %7 : vector<8x128xf32>
    %c0_6 = arith.constant 0 : index
    %c0_7 = arith.constant 0 : index
    %9 = vector.load %arg3[%c0_6, %c0_7] : memref<128x128xbf16, #tpu.memory_space<vmem>>, vector<128x128xbf16>
    %c1 = arith.constant 1 : index
    %c0_8 = arith.constant 0 : index
    %10 = vector.load %arg5[%c1, %c0_8] : memref<3x128xf32, #tpu.memory_space<vmem>>, vector<1x128xf32>
    %11 = arith.truncf %8 : vector<8x128xf32> to vector<8x128xbf16>
    %cst_9 = arith.constant dense<0.000000e+00> : vector<8x128xf32>
    %12 = tpu.matmul %11, %9, %cst_9 {dimension_numbers = #tpu.dot_dimension_numbers<[1], [0], [0], [1], [0, 0, 1, 1], [], []>} : vector<8x128xbf16>, vector<128x128xbf16>, vector<8x128xf32> -> vector<8x128xf32>
    %13 = vector.broadcast %10 : vector<1x128xf32> to vector<8x128xf32>
    %14 = arith.addf %12, %13 : vector<8x128xf32>
    %cst_10 = arith.constant 0.000000e+00 : f32
    %15 = vector.broadcast %cst_10 : f32 to vector<8x128xf32>
    %16 = arith.maximumf %14, %15 : vector<8x128xf32>
    %c0_11 = arith.constant 0 : index
    %c0_12 = arith.constant 0 : index
    %17 = vector.load %arg4[%c0_11, %c0_12] : memref<128x128xbf16, #tpu.memory_space<vmem>>, vector<128x128xbf16>
    %c2 = arith.constant 2 : index
    %c0_13 = arith.constant 0 : index
    %18 = vector.load %arg5[%c2, %c0_13] : memref<3x128xf32, #tpu.memory_space<vmem>>, vector<1x128xf32>
    %19 = arith.truncf %16 : vector<8x128xf32> to vector<8x128xbf16>
    %cst_14 = arith.constant dense<0.000000e+00> : vector<8x128xf32>
    %20 = tpu.matmul %19, %17, %cst_14 {dimension_numbers = #tpu.dot_dimension_numbers<[1], [0], [0], [1], [0, 0, 1, 1], [], []>} : vector<8x128xbf16>, vector<128x128xbf16>, vector<8x128xf32> -> vector<8x128xf32>
    %21 = vector.broadcast %18 : vector<1x128xf32> to vector<8x128xf32>
    %22 = arith.addf %20, %21 : vector<8x128xf32>
    %c0_15 = arith.constant 0 : index
    %c0_16 = arith.constant 0 : index
    %23 = vector.load %arg6[%c0_15, %c0_16] : memref<8x128xf32, #tpu.memory_space<vmem>>, vector<8x128xf32>
    tpu.vector_store %arg6[%c0_15, %c0_16], %22 {strides = array<i32>} : memref<8x128xf32, #tpu.memory_space<vmem>>, vector<8x128xf32>,
    return
  }
  func.func @transform_0(%arg0: i32) -> (i32, i32) {
    %c0_i32 = arith.constant 0 : i32
    %c0_i32_0 = arith.constant 0 : i32
    return %arg0, %c0_i32 : i32, i32
  }
  func.func @transform_1(%arg0: i32) -> (i32, i32) {
    %c0_i32 = arith.constant 0 : i32
    %c0_i32_0 = arith.constant 0 : i32
    %c0_i32_1 = arith.constant 0 : i32
    return %c0_i32, %c0_i32_0 : i32, i32
  }
  func.func @transform_2(%arg0: i32) -> (i32, i32) {
    %c0_i32 = arith.constant 0 : i32
    %c0_i32_0 = arith.constant 0 : i32
    %c0_i32_1 = arith.constant 0 : i32
    return %c0_i32, %c0_i32_0 : i32, i32
  }
  func.func @transform_3(%arg0: i32) -> (i32, i32) {
    %c0_i32 = arith.constant 0 : i32
    %c0_i32_0 = arith.constant 0 : i32
    %c0_i32_1 = arith.constant 0 : i32
    return %c0_i32, %c0_i32_0 : i32, i32
  }
  func.func @transform_4(%arg0: i32) -> (i32, i32) {
    %c0_i32 = arith.constant 0 : i32
    %c0_i32_0 = arith.constant 0 : i32
    %c0_i32_1 = arith.constant 0 : i32
    return %c0_i32, %c0_i32_0 : i32, i32
  }
  func.func @transform_5(%arg0: i32) -> (i32, i32) {
    %c0_i32 = arith.constant 0 : i32
    %c0_i32_0 = arith.constant 0 : i32
    return %arg0, %c0_i32 : i32, i32
  }
}

module attributes {stable_mosaic.version = 11 : i64} {
  func.func @_fnn_kernel(%arg0: i32, %arg1: memref<8x32xf32, #tpu.memory_space<vmem>>, %arg2: memref<32x128xbf16, #tpu.memory_space<vmem>>, %arg3: memref<128x128xbf16, #tpu.memory_space<vmem>>, %arg4: memref<128x128xbf16, #tpu.memory_space<vmem>>, %arg5: memref<3x128xf32, #tpu.memory_space<vmem>>, %arg6: memref<8x128xf32, #tpu.memory_space<vmem>>) attributes {dimension_semantics = [#tpu.dimension_semantics<parallel>], iteration_bounds = array<i64: 1>, scalar_prefetch = 0 : i64, scratch_operands = 0 : i64, tpu.core_type = #tpu.core_type<tc>, window_params = [{transform_indices = @transform_0, window_bounds = array<i64: 8, 32>}, {pipeline_mode = #tpu.pipeline_mode<synchronous>, transform_indices = @transform_1, window_bounds = array<i64: 32, 128>}, {pipeline_mode = #tpu.pipeline_mode<synchronous>, transform_indices = @transform_2, window_bounds = array<i64: 128, 128>}, {pipeline_mode = #tpu.pipeline_mode<synchronous>, transform_indices = @transform_3, window_bounds = array<i64: 128, 128>}, {pipeline_mode = #tpu.pipeline_mode<synchronous>, transform_indices = @transform_4, window_bounds = array<i64: 3, 128>}, {transform_indices = @transform_5, window_bounds = array<i64: 8, 128>}]} {
    %c0 = arith.constant 0 : index
    %c0_0 = arith.constant 0 : index
    %0 = vector.load %arg1[%c0, %c0_0] : memref<8x32xf32, #tpu.memory_space<vmem>>, vector<8x32xf32>
    %c0_1 = arith.constant 0 : index
    %c0_2 = arith.constant 0 : index
    %1 = vector.load %arg2[%c0_1, %c0_2] : memref<32x128xbf16, #tpu.memory_space<vmem>>, vector<32x128xbf16>
    %c0_3 = arith.constant 0 : index
    %c0_4 = arith.constant 0 : index
    %2 = vector.load %arg5[%c0_3, %c0_4] : memref<3x128xf32, #tpu.memory_space<vmem>>, vector<1x128xf32>
    %3 = arith.truncf %0 : vector<8x32xf32> to vector<8x32xbf16>
    %cst = arith.constant dense<0.000000e+00> : vector<8x128xf32>
    %4 = tpu.matmul %3, %1, %cst {dimension_numbers = #tpu.dot_dimension_numbers<[1], [0], [0], [1], [0, 0, 1, 1], [], []>} : vector<8x32xbf16>, vector<32x128xbf16>, vector<8x128xf32> -> vector<8x128xf32>
    %5 = vector.broadcast %2 : vector<1x128xf32> to vector<8x128xf32>
    %6 = arith.addf %4, %5 : vector<8x128xf32>
    %cst_5 = arith.constant 0.000000e+00 : f32
    %7 = vector.broadcast %cst_5 : f32 to vector<8x128xf32>
    %8 = arith.maximumf %6, %7 : vector<8x128xf32>
    %c0_6 = arith.constant 0 : index
    %c0_7 = arith.constant 0 : index
    %9 = vector.load %arg3[%c0_6, %c0_7] : memref<128x128xbf16, #tpu.memory_space<vmem>>, vector<128x128xbf16>
    %c1 = arith.constant 1 : index
    %c0_8 = arith.constant 0 : index
    %10 = vector.load %arg5[%c1, %c0_8] : memref<3x128xf32, #tpu.memory_space<vmem>>, vector<1x128xf32>
    %11 = arith.truncf %8 : vector<8x128xf32> to vector<8x128xbf16>
    %cst_9 = arith.constant dense<0.000000e+00> : vector<8x128xf32>
    %12 = tpu.matmul %11, %9, %cst_9 {dimension_numbers = #tpu.dot_dimension_numbers<[1], [0], [0], [1], [0, 0, 1, 1], [], []>} : vector<8x128xbf16>, vector<128x128xbf16>, vector<8x128xf32> -> vector<8x128xf32>
    %13 = vector.broadcast %10 : vector<1x128xf32> to vector<8x128xf32>
    %14 = arith.addf %12, %13 : vector<8x128xf32>
    %cst_10 = arith.constant 0.000000e+00 : f32
    %15 = vector.broadcast %cst_10 : f32 to vector<8x128xf32>
    %16 = arith.maximumf %14, %15 : vector<8x128xf32>
    %c0_11 = arith.constant 0 : index
    %c0_12 = arith.constant 0 : index
    %17 = vector.load %arg4[%c0_11, %c0_12] : memref<128x128xbf16, #tpu.memory_space<vmem>>, vector<128x128xbf16>
    %c2 = arith.constant 2 : index
    %c0_13 = arith.constant 0 : index
    %18 = vector.load %arg5[%c2, %c0_13] : memref<3x128xf32, #tpu.memory_space<vmem>>, vector<1x128xf32>
    %19 = arith.truncf %16 : vector<8x128xf32> to vector<8x128xbf16>
    %cst_14 = arith.constant dense<0.000000e+00> : vector<8x128xf32>
    %20 = tpu.matmul %19, %17, %cst_14 {dimension_numbers = #tpu.dot_dimension_numbers<[1], [0], [0], [1], [0, 0, 1, 1], [], []>} : vector<8x128xbf16>, vector<128x128xbf16>, vector<8x128xf32> -> vector<8x128xf32>
    %21 = vector.broadcast %18 : vector<1x128xf32> to vector<8x128xf32>
    %22 = arith.addf %20, %21 : vector<8x128xf32>
    %c0_15 = arith.constant 0 : index
    %c0_16 = arith.constant 0 : index
    %23 = vector.load %arg6[%c0_15, %c0_16] : memref<8x128xf32, #tpu.memory_space<vmem>>, vector<8x128xf32>
    tpu.vector_store %arg6[%c0_15, %c0_16], %22 {strides = array<i32>} : memref<8x128xf32, #tpu.memory_space<vmem>>, vector<8x128xf32>,
    return
  }
  func.func @transform_0(%arg0: i32) -> (i32, i32) {
    %c0_i32 = arith.constant 0 : i32
    %c0_i32_0 = arith.constant 0 : i32
    return %arg0, %c0_i32 : i32, i32
  }
  func.func @transform_1(%arg0: i32) -> (i32, i32) {
    %c0_i32 = arith.constant 0 : i32
    %c0_i32_0 = arith.constant 0 : i32
    %c0_i32_1 = arith.constant 0 : i32
    return %c0_i32, %c0_i32_0 : i32, i32
  }
  func.func @transform_2(%arg0: i32) -> (i32, i32) {
    %c0_i32 = arith.constant 0 : i32
    %c0_i32_0 = arith.constant 0 : i32
    %c0_i32_1 = arith.constant 0 : i32
    return %c0_i32, %c0_i32_0 : i32, i32
  }
  func.func @transform_3(%arg0: i32) -> (i32, i32) {
    %c0_i32 = arith.constant 0 : i32
    %c0_i32_0 = arith.constant 0 : i32
    %c0_i32_1 = arith.constant 0 : i32
    return %c0_i32, %c0_i32_0 : i32, i32
  }
  func.func @transform_4(%arg0: i32) -> (i32, i32) {
    %c0_i32 = arith.constant 0 : i32
    %c0_i32_0 = arith.constant 0 : i32
    %c0_i32_1 = arith.constant 0 : i32
    return %c0_i32, %c0_i32_0 : i32, i32
  }
  func.func @transform_5(%arg0: i32) -> (i32, i32) {
    %c0_i32 = arith.constant 0 : i32
    %c0_i32_0 = arith.constant 0 : i32
    return %arg0, %c0_i32 : i32, i32
  }
}

</mosaic_0001>

<llo_original>
// kernel: tpu_custom_call.1
$region0: #{tpu_custom_call.1}
  #allocation0 [shape = 'u32[]', space=smem, size = 0x4, offset = 0x4, fixed_abs, tag = 'smem constant byte address 0x4 - core index']
  #allocation1 [shape = 'u32[144,128]{1,0:T(1,128)}', space=vmem, size = 0x12000, scoped, tag = 'internal scratch']
  %s0 = inlined_call_operand.hbm [shape: f32[8,32], index: 0, kind: input, shape index: {}]
  %s1 = inlined_call_operand.hbm [shape: bf16[32,128], index: 1, kind: input, shape index: {}]
  %s2 = inlined_call_operand.hbm [shape: bf16[128,128], index: 2, kind: input, shape index: {}]
  %s3 = inlined_call_operand.hbm [shape: bf16[128,128], index: 3, kind: input, shape index: {}]
  %s4 = inlined_call_operand.vmem [shape: f32[3,128], index: 4, kind: input, shape index: {}]
  %s5 = inlined_call_operand.hbm [shape: f32[8,128], index: 5, kind: output, shape index: {}]
  %s6 = sld [smem:[#allocation0]]
  $region46: #{tpu_custom_call.1} parent=0
    _
  %s8 = ssub.s32 1, %s6
  %s9 = scalar_select 0, %s8, %s6
  $region1: #{tpu_custom_call.1} parent=0
    #allocation2 [shape = 'u8[4096]{0}', space=vmem, size = 0x1000, scoped, tag = 'input window, operand 0, single buffered']
    #allocation3 [shape = 's32[1]{0}', space=sflag, size = 0x4, scoped, tag = 'scoped memory for tpu_custom_call.1']
    #allocation4 [shape = 's32[1]{0}', space=sflag, size = 0x4, scoped, tag = 'scoped memory for tpu_custom_call.1']
    #allocation5 [shape = 'u8[8192]{0}', space=vmem, size = 0x2000, scoped, tag = 'input window, operand 1, single buffered']
    #allocation6 [shape = 's32[1]{0}', space=sflag, size = 0x4, scoped, tag = 'scoped memory for tpu_custom_call.1']
    #allocation7 [shape = 'u8[32768]{0}', space=vmem, size = 0x8000, scoped, tag = 'input window, operand 2, single buffered']
    #allocation8 [shape = 'u8[32768]{0}', space=vmem, size = 0x8000, scoped, tag = 'input window, operand 3, single buffered']
    #allocation9 [shape = 's32[1]{0}', space=sflag, size = 0x4, scoped, tag = 'scoped memory for tpu_custom_call.1']
    #allocation10 [shape = 'u8[4096]{0}', space=vmem, size = 0x1000, scoped, tag = 'output window, operand 0, single buffered']
    %10 = vsyncpa [#allocation3], 0
    %11 = vsyncpa [#allocation6], 0
    %12 = vsyncpa [#allocation9], 0
    %13 = vsyncpa [#allocation4], 0
    // Predicated region
    $region2: #{tpu_custom_call.1} parent=1 // pred_check
      _
    $region3: #{tpu_custom_call.1} parent=1 // pred_check_branch
      %15 = sbr.rel (0) target = $region5
    $region4: #{tpu_custom_call.1} parent=1 // pred_region
      %s17 = ssub.s32 128, 128
      %18 = vsyncadd [#allocation3], %s17
      %s20 = sshll.u32 [#allocation2], 4
      %s21 = int_to_ptr.vmem [resolvable:$true] %s20
      %23 = dma.hbm_to_vmem [thread:$0]  %s0, 128, %s21, [#allocation3]
    $region5: #{tpu_custom_call.1} parent=1 // pred_fallthru
      _
    // Predicated region
    $region6: #{tpu_custom_call.1} parent=1 // pred_check
      _
    $region7: #{tpu_custom_call.1} parent=1 // pred_check_branch
      %25 = sbr.rel (0) target = $region9
    $region8: #{tpu_custom_call.1} parent=1 // pred_region
      %s27 = ssub.s32 256, 256
      %28 = vsyncadd [#allocation6], %s27
      %s29 = sshll.u32 [#allocation5], 4
      %s30 = int_to_ptr.vmem [resolvable:$true] %s29
      %35 = dma.hbm_to_vmem [thread:$0]  %s1, 256, %s30, [#allocation6], 64, 64, 4
    $region9: #{tpu_custom_call.1} parent=1 // pred_fallthru
      _
    // Predicated region
    $region10: #{tpu_custom_call.1} parent=1 // pred_check
      _
    $region11: #{tpu_custom_call.1} parent=1 // pred_check_branch
      %37 = sbr.rel (0) target = $region13
    $region12: #{tpu_custom_call.1} parent=1 // pred_region
      %s39 = ssub.s32 1024, 1024
      %40 = vsyncadd [#allocation6], %s39
      %s41 = sshll.u32 [#allocation7], 4
      %s42 = int_to_ptr.vmem [resolvable:$true] %s41
      %47 = dma.hbm_to_vmem [thread:$0]  %s2, 1024, %s42, [#allocation6], 64, 64, 4
    $region13: #{tpu_custom_call.1} parent=1 // pred_fallthru
      _
    // Predicated region
    $region14: #{tpu_custom_call.1} parent=1 // pred_check
      _
    $region15: #{tpu_custom_call.1} parent=1 // pred_check_branch
      %49 = sbr.rel (0) target = $region17
    $region16: #{tpu_custom_call.1} parent=1 // pred_region
      %s51 = ssub.s32 1024, 1024
      %52 = vsyncadd [#allocation9], %s51
      %s53 = sshll.u32 [#allocation8], 4
      %s54 = int_to_ptr.vmem [resolvable:$true] %s53
      %59 = dma.hbm_to_vmem [thread:$0]  %s3, 1024, %s54, [#allocation9], 64, 64, 4
    $region17: #{tpu_custom_call.1} parent=1 // pred_fallthru
      _
    // Predicated region
    $region18: #{tpu_custom_call.1} parent=1 // pred_check
      _
    $region19: #{tpu_custom_call.1} parent=1 // pred_check_branch
      %61 = sbr.rel (0) target = $region21
    $region20: #{tpu_custom_call.1} parent=1 // pred_region
      _
    $region21: #{tpu_custom_call.1} parent=1 // pred_fallthru
      _
    // Predicated region
    $region22: #{tpu_custom_call.1} parent=1 // pred_check
      _
    $region23: #{tpu_custom_call.1} parent=1 // pred_check_branch
      %63 = sbr.rel (0) target = $region25
    $region24: #{tpu_custom_call.1} parent=1 // pred_region
      %64 = dma.done [#allocation3], 128
    $region25: #{tpu_custom_call.1} parent=1 // pred_fallthru
      _
    // Predicated region
    $region26: #{tpu_custom_call.1} parent=1 // pred_check
      _
    $region27: #{tpu_custom_call.1} parent=1 // pred_check_branch
      %66 = sbr.rel (0) target = $region29
    $region28: #{tpu_custom_call.1} parent=1 // pred_region
      %67 = dma.done [#allocation6], 256
    $region29: #{tpu_custom_call.1} parent=1 // pred_fallthru
      _
    // Predicated region
    $region30: #{tpu_custom_call.1} parent=1 // pred_check
      _
    $region31: #{tpu_custom_call.1} parent=1 // pred_check_branch
      %69 = sbr.rel (0) target = $region33
    $region32: #{tpu_custom_call.1} parent=1 // pred_region
      %70 = dma.done [#allocation6], 1024
    $region33: #{tpu_custom_call.1} parent=1 // pred_fallthru
      _
    // Predicated region
    $region34: #{tpu_custom_call.1} parent=1 // pred_check
      _
    $region35: #{tpu_custom_call.1} parent=1 // pred_check_branch
      %72 = sbr.rel (0) target = $region37
    $region36: #{tpu_custom_call.1} parent=1 // pred_region
      %73 = dma.done [#allocation9], 1024
    $region37: #{tpu_custom_call.1} parent=1 // pred_fallthru
      _
    %v75 = vld [vmem:[#allocation2] sm:$0xff]
    %v76 = vld [vmem:[#allocation5] sm:$0xf]
    %v77 = vld [vmem:[#allocation5 + $0x4] sm:$0xf]
    %v78 = vld [vmem:[#allocation5 + $0x8] sm:$0xf]
    %v79 = vld [vmem:[#allocation5 + $0xc] sm:$0xf]
    %v80 = vld [vmem:[%s4] sm:$0x1]
    %v81 = vpack.c.bf16 %v75, %v75
    %v82 = vlaneseq
    %v83 = vshrl.u32 %v82, 7
    %v84 = vsub.s32 0, %v83
    %v85 = vrot.slane %v80, %v84
    %v90 = vunpack.c.l.b16 %v76
    %v91 = vunpack.c.l.b16 %v77
    %v92 = vunpack.c.l.b16 %v78
    %v93 = vunpack.c.l.b16 %v79
    %v94 = vpack.c.b16 %v91, %v90
    %v95 = vpack.c.b16 %v93, %v92
    %vm98 = vcmask 261120
    %v100 = vsel %vm98, %v81, 0
    %102 = vmatprep.subr.bf16.mxu0 0
    %103 = vmatpush1.bf16.msra.mxu0 %v94
    %104 = vmatprep.subr.bf16.mxu0 0
    %105 = vmatpush1.bf16.msra.mxu0 %v95
    %106 = vmatprep.subr.bf16.mxu0 0
    %107 = vmatpush1.bf16.msra.mxu0 0
    %108 = vmatprep.subr.bf16.mxu0 0
    %109 = vmatpush1.bf16.msra.mxu0 0
    %110 = vmatprep.subr.bf16.mxu0 0
    %111 = vmatpush1.bf16.msra.mxu0 0
    %112 = vmatprep.subr.bf16.mxu0 0
    %113 = vmatpush1.bf16.msra.mxu0 0
    %114 = vmatprep.subr.bf16.mxu0 0
    %115 = vmatpush1.bf16.msra.mxu0 0
    %116 = vmatprep.subr.bf16.mxu0 0
    %117 = vmatpush1.bf16.msra.mxu0 0
    %118 = vmatprep.subr.bf16.mxu0 0
    %119 = vmatpush1.bf16.msra.mxu0 0
    %120 = vmatprep.subr.bf16.mxu0 0
    %121 = vmatpush1.bf16.msra.mxu0 0
    %122 = vmatprep.subr.bf16.mxu0 0
    %123 = vmatpush1.bf16.msra.mxu0 0
    %124 = vmatprep.subr.bf16.mxu0 0
    %125 = vmatpush1.bf16.msra.mxu0 0
    %126 = vmatprep.subr.bf16.mxu0 0
    %127 = vmatpush1.bf16.msra.mxu0 0
    %128 = vmatprep.subr.bf16.mxu0 0
    %129 = vmatpush1.bf16.msra.mxu0 0
    %130 = vmatprep.subr.bf16.mxu0 0
    %131 = vmatpush1.bf16.msra.mxu0 0
    %132 = vmatprep.subr.bf16.mxu0 0
    %133 = vmatpush1.bf16.msra.mxu0 0
    %134 = vmatprep.mubr.bf16.mxu0 0
    %135 = vmatmul.mubr.bf16.gmra.mrb[0].mxu0 %v100
    %v136 = vpop.f32.mrb[0].mxu0
    %v137 = vadd.f32 %v85, %v136
    %v138 = vpop.f32.mrb[0].mxu0
    %v139 = vpop.f32.mrb[0].mxu0
    %v140 = vpop.f32.mrb[0].mxu0
    %141 = vdwg.mxu0
    %v142 = vmax.f32 %v137, 0.0
    %v143 = vld [vmem:[#allocation7] sm:$0xf]
    %v144 = vld [vmem:[#allocation7 + $0x4] sm:$0xf]
    %v145 = vld [vmem:[#allocation7 + $0x8] sm:$0xf]
    %v146 = vld [vmem:[#allocation7 + $0xc] sm:$0xf]
    %v147 = vld [vmem:[#allocation7 + $0x10] sm:$0xf]
    %v148 = vld [vmem:[#allocation7 + $0x14] sm:$0xf]
    %v149 = vld [vmem:[#allocation7 + $0x18] sm:$0xf]
    %v150 = vld [vmem:[#allocation7 + $0x1c] sm:$0xf]
    %v151 = vld [vmem:[#allocation7 + $0x20] sm:$0xf]
    %v152 = vld [vmem:[#allocation7 + $0x24] sm:$0xf]
    %v153 = vld [vmem:[#allocation7 + $0x28] sm:$0xf]
    %v154 = vld [vmem:[#allocation7 + $0x2c] sm:$0xf]
    %v155 = vld [vmem:[#allocation7 + $0x30] sm:$0xf]
    %v156 = vld [vmem:[#allocation7 + $0x34] sm:$0xf]
    %v157 = vld [vmem:[#allocation7 + $0x38] sm:$0xf]
    %v158 = vld [vmem:[#allocation7 + $0x3c] sm:$0xf]
    %v159 = vld [vmem:[%s4 + $0x1] sm:$0x1]
    %v160 = vpack.c.bf16 %v142, %v142
    %v161 = vlaneseq
    %v162 = vshrl.u32 %v161, 7
    %v163 = vsub.s32 0, %v162
    %v164 = vrot.slane %v159, %v163
    %v181 = vunpack.c.l.b16 %v143
    %v182 = vunpack.c.l.b16 %v144
    %v183 = vunpack.c.l.b16 %v145
    %v184 = vunpack.c.l.b16 %v146
    %v185 = vunpack.c.l.b16 %v147
    %v186 = vunpack.c.l.b16 %v148
    %v187 = vunpack.c.l.b16 %v149
    %v188 = vunpack.c.l.b16 %v150
    %v189 = vunpack.c.l.b16 %v151
    %v190 = vunpack.c.l.b16 %v152
    %v191 = vunpack.c.l.b16 %v153
    %v192 = vunpack.c.l.b16 %v154
    %v193 = vunpack.c.l.b16 %v155
    %v194 = vunpack.c.l.b16 %v156
    %v195 = vunpack.c.l.b16 %v157
    %v196 = vunpack.c.l.b16 %v158
    %v197 = vpack.c.b16 %v182, %v181
    %v198 = vpack.c.b16 %v184, %v183
    %v199 = vpack.c.b16 %v186, %v185
    %v200 = vpack.c.b16 %v188, %v187
    %v201 = vpack.c.b16 %v190, %v189
    %v202 = vpack.c.b16 %v192, %v191
    %v203 = vpack.c.b16 %v194, %v193
    %v204 = vpack.c.b16 %v196, %v195
    %213 = vmatprep.subr.bf16.mxu0 0
    %214 = vmatpush1.bf16.msra.mxu0 %v197
    %215 = vmatprep.subr.bf16.mxu0 0
    %216 = vmatpush1.bf16.msra.mxu0 %v198
    %217 = vmatprep.subr.bf16.mxu0 0
    %218 = vmatpush1.bf16.msra.mxu0 %v199
    %219 = vmatprep.subr.bf16.mxu0 0
    %220 = vmatpush1.bf16.msra.mxu0 %v200
    %221 = vmatprep.subr.bf16.mxu0 0
    %222 = vmatpush1.bf16.msra.mxu0 %v201
    %223 = vmatprep.subr.bf16.mxu0 0
    %224 = vmatpush1.bf16.msra.mxu0 %v202
    %225 = vmatprep.subr.bf16.mxu0 0
    %226 = vmatpush1.bf16.msra.mxu0 %v203
    %227 = vmatprep.subr.bf16.mxu0 0
    %228 = vmatpush1.bf16.msra.mxu0 %v204
    %229 = vmatprep.subr.bf16.mxu0 0
    %230 = vmatpush1.bf16.msra.mxu0 0
    %231 = vmatprep.subr.bf16.mxu0 0
    %232 = vmatpush1.bf16.msra.mxu0 0
    %233 = vmatprep.subr.bf16.mxu0 0
    %234 = vmatpush1.bf16.msra.mxu0 0
    %235 = vmatprep.subr.bf16.mxu0 0
    %236 = vmatpush1.bf16.msra.mxu0 0
    %237 = vmatprep.subr.bf16.mxu0 0
    %238 = vmatpush1.bf16.msra.mxu0 0
    %239 = vmatprep.subr.bf16.mxu0 0
    %240 = vmatpush1.bf16.msra.mxu0 0
    %241 = vmatprep.subr.bf16.mxu0 0
    %242 = vmatpush1.bf16.msra.mxu0 0
    %243 = vmatprep.subr.bf16.mxu0 0
    %244 = vmatpush1.bf16.msra.mxu0 0
    %245 = vmatprep.mubr.bf16.mxu0 0
    %246 = vmatmul.mubr.bf16.gmra.mrb[0].mxu0 %v160
    %v247 = vpop.f32.mrb[0].mxu0
    %v248 = vadd.f32 %v164, %v247
    %v249 = vpop.f32.mrb[0].mxu0
    %v250 = vpop.f32.mrb[0].mxu0
    %v251 = vpop.f32.mrb[0].mxu0
    %252 = vdwg.mxu0
    %v253 = vmax.f32 %v248, 0.0
    %v254 = vld [vmem:[#allocation8] sm:$0xf]
    %v255 = vld [vmem:[#allocation8 + $0x4] sm:$0xf]
    %v256 = vld [vmem:[#allocation8 + $0x8] sm:$0xf]
    %v257 = vld [vmem:[#allocation8 + $0xc] sm:$0xf]
    %v258 = vld [vmem:[#allocation8 + $0x10] sm:$0xf]
    %v259 = vld [vmem:[#allocation8 + $0x14] sm:$0xf]
    %v260 = vld [vmem:[#allocation8 + $0x18] sm:$0xf]
    %v261 = vld [vmem:[#allocation8 + $0x1c] sm:$0xf]
    %v262 = vld [vmem:[#allocation8 + $0x20] sm:$0xf]
    %v263 = vld [vmem:[#allocation8 + $0x24] sm:$0xf]
    %v264 = vld [vmem:[#allocation8 + $0x28] sm:$0xf]
    %v265 = vld [vmem:[#allocation8 + $0x2c] sm:$0xf]
    %v266 = vld [vmem:[#allocation8 + $0x30] sm:$0xf]
    %v267 = vld [vmem:[#allocation8 + $0x34] sm:$0xf]
    %v268 = vld [vmem:[#allocation8 + $0x38] sm:$0xf]
    %v269 = vld [vmem:[#allocation8 + $0x3c] sm:$0xf]
    %v270 = vld [vmem:[%s4 + $0x2] sm:$0x1]
    %v271 = vpack.c.bf16 %v253, %v253
    %v272 = vlaneseq
    %v273 = vshrl.u32 %v272, 7
    %v274 = vsub.s32 0, %v273
    %v275 = vrot.slane %v270, %v274
    %v292 = vunpack.c.l.b16 %v254
    %v293 = vunpack.c.l.b16 %v255
    %v294 = vunpack.c.l.b16 %v256
    %v295 = vunpack.c.l.b16 %v257
    %v296 = vunpack.c.l.b16 %v258
    %v297 = vunpack.c.l.b16 %v259
    %v298 = vunpack.c.l.b16 %v260
    %v299 = vunpack.c.l.b16 %v261
    %v300 = vunpack.c.l.b16 %v262
    %v301 = vunpack.c.l.b16 %v263
    %v302 = vunpack.c.l.b16 %v264
    %v303 = vunpack.c.l.b16 %v265
    %v304 = vunpack.c.l.b16 %v266
    %v305 = vunpack.c.l.b16 %v267
    %v306 = vunpack.c.l.b16 %v268
    %v307 = vunpack.c.l.b16 %v269
    %v308 = vpack.c.b16 %v293, %v292
    %v309 = vpack.c.b16 %v295, %v294
    %v310 = vpack.c.b16 %v297, %v296
    %v311 = vpack.c.b16 %v299, %v298
    %v312 = vpack.c.b16 %v301, %v300
    %v313 = vpack.c.b16 %v303, %v302
    %v314 = vpack.c.b16 %v305, %v304
    %v315 = vpack.c.b16 %v307, %v306
    %324 = vmatprep.subr.bf16.mxu0 0
    %325 = vmatpush1.bf16.msra.mxu0 %v308
    %326 = vmatprep.subr.bf16.mxu0 0
    %327 = vmatpush1.bf16.msra.mxu0 %v309
    %328 = vmatprep.subr.bf16.mxu0 0
    %329 = vmatpush1.bf16.msra.mxu0 %v310
    %330 = vmatprep.subr.bf16.mxu0 0
    %331 = vmatpush1.bf16.msra.mxu0 %v311
    %332 = vmatprep.subr.bf16.mxu0 0
    %333 = vmatpush1.bf16.msra.mxu0 %v312
    %334 = vmatprep.subr.bf16.mxu0 0
    %335 = vmatpush1.bf16.msra.mxu0 %v313
    %336 = vmatprep.subr.bf16.mxu0 0
    %337 = vmatpush1.bf16.msra.mxu0 %v314
    %338 = vmatprep.subr.bf16.mxu0 0
    %339 = vmatpush1.bf16.msra.mxu0 %v315
    %340 = vmatprep.subr.bf16.mxu0 0
    %341 = vmatpush1.bf16.msra.mxu0 0
    %342 = vmatprep.subr.bf16.mxu0 0
    %343 = vmatpush1.bf16.msra.mxu0 0
    %344 = vmatprep.subr.bf16.mxu0 0
    %345 = vmatpush1.bf16.msra.mxu0 0
    %346 = vmatprep.subr.bf16.mxu0 0
    %347 = vmatpush1.bf16.msra.mxu0 0
    %348 = vmatprep.subr.bf16.mxu0 0
    %349 = vmatpush1.bf16.msra.mxu0 0
    %350 = vmatprep.subr.bf16.mxu0 0
    %351 = vmatpush1.bf16.msra.mxu0 0
    %352 = vmatprep.subr.bf16.mxu0 0
    %353 = vmatpush1.bf16.msra.mxu0 0
    %354 = vmatprep.subr.bf16.mxu0 0
    %355 = vmatpush1.bf16.msra.mxu0 0
    %356 = vmatprep.mubr.bf16.mxu0 0
    %357 = vmatmul.mubr.bf16.gmra.mrb[0].mxu0 %v271
    %v358 = vpop.f32.mrb[0].mxu0
    %v359 = vadd.f32 %v275, %v358
    %v360 = vpop.f32.mrb[0].mxu0
    %v361 = vpop.f32.mrb[0].mxu0
    %v362 = vpop.f32.mrb[0].mxu0
    %363 = vdwg.mxu0
    %364 = vst [vmem:[#allocation10] sm:$0xff] %v359
    // Predicated region
    $region38: #{tpu_custom_call.1} parent=1 // pred_check
      _
    $region39: #{tpu_custom_call.1} parent=1 // pred_check_branch
      %366 = sbr.rel (0) target = $region41
    $region40: #{tpu_custom_call.1} parent=1 // pred_region
      %s368 = ssub.s32 128, 128
      %369 = vsyncadd [#allocation4], %s368
      %s371 = sshll.u32 [#allocation10], 4
      %s372 = int_to_ptr.vmem [resolvable:$true] %s371
      %374 = dma.vmem_to_hbm [thread:$0]  %s372, 128, %s5, [#allocation4]
    $region41: #{tpu_custom_call.1} parent=1 // pred_fallthru
      _
    // Predicated region
    $region42: #{tpu_custom_call.1} parent=1 // pred_check
      _
    $region43: #{tpu_custom_call.1} parent=1 // pred_check_branch
      %376 = sbr.rel (0) target = $region45
    $region44: #{tpu_custom_call.1} parent=1 // pred_region
      %377 = dma.done [#allocation4], 128
    $region45: #{tpu_custom_call.1} parent=1 // pred_fallthru
      _
    %378 = vsyncpa [#allocation3], 1
    %379 = vsyncpa [#allocation6], 1
    %380 = vsyncpa [#allocation9], 1
    %381 = vsyncpa [#allocation4], 1

// kernel: tpu_custom_call.1
$region0: #{tpu_custom_call.1}
  #allocation0 [shape = 'u32[]', space=smem, size = 0x4, offset = 0x4, fixed_abs, tag = 'smem constant byte address 0x4 - core index']
  #allocation1 [shape = 'u32[144,128]{1,0:T(1,128)}', space=vmem, size = 0x12000, scoped, tag = 'internal scratch']
  %s0 = inlined_call_operand.hbm [shape: f32[8,32], index: 0, kind: input, shape index: {}]
  %s1 = inlined_call_operand.hbm [shape: bf16[32,128], index: 1, kind: input, shape index: {}]
  %s2 = inlined_call_operand.hbm [shape: bf16[128,128], index: 2, kind: input, shape index: {}]
  %s3 = inlined_call_operand.hbm [shape: bf16[128,128], index: 3, kind: input, shape index: {}]
  %s4 = inlined_call_operand.vmem [shape: f32[3,128], index: 4, kind: input, shape index: {}]
  %s5 = inlined_call_operand.hbm [shape: f32[8,128], index: 5, kind: output, shape index: {}]
  %s6 = sld [smem:[#allocation0]]
  $region46: #{tpu_custom_call.1} parent=0
    _
  %s8 = ssub.s32 1, %s6
  %s9 = scalar_select 0, %s8, %s6
  $region1: #{tpu_custom_call.1} parent=0
    #allocation2 [shape = 'u8[4096]{0}', space=vmem, size = 0x1000, scoped, tag = 'input window, operand 0, single buffered']
    #allocation3 [shape = 's32[1]{0}', space=sflag, size = 0x4, scoped, tag = 'scoped memory for tpu_custom_call.1']
    #allocation4 [shape = 's32[1]{0}', space=sflag, size = 0x4, scoped, tag = 'scoped memory for tpu_custom_call.1']
    #allocation5 [shape = 'u8[8192]{0}', space=vmem, size = 0x2000, scoped, tag = 'input window, operand 1, single buffered']
    #allocation6 [shape = 's32[1]{0}', space=sflag, size = 0x4, scoped, tag = 'scoped memory for tpu_custom_call.1']
    #allocation7 [shape = 'u8[32768]{0}', space=vmem, size = 0x8000, scoped, tag = 'input window, operand 2, single buffered']
    #allocation8 [shape = 'u8[32768]{0}', space=vmem, size = 0x8000, scoped, tag = 'input window, operand 3, single buffered']
    #allocation9 [shape = 's32[1]{0}', space=sflag, size = 0x4, scoped, tag = 'scoped memory for tpu_custom_call.1']
    #allocation10 [shape = 'u8[4096]{0}', space=vmem, size = 0x1000, scoped, tag = 'output window, operand 0, single buffered']
    %10 = vsyncpa [#allocation3], 0
    %11 = vsyncpa [#allocation6], 0
    %12 = vsyncpa [#allocation9], 0
    %13 = vsyncpa [#allocation4], 0
    // Predicated region
    $region2: #{tpu_custom_call.1} parent=1 // pred_check
      _
    $region3: #{tpu_custom_call.1} parent=1 // pred_check_branch
      %15 = sbr.rel (0) target = $region5
    $region4: #{tpu_custom_call.1} parent=1 // pred_region
      %s17 = ssub.s32 128, 128
      %18 = vsyncadd [#allocation3], %s17
      %s20 = sshll.u32 [#allocation2], 4
      %s21 = int_to_ptr.vmem [resolvable:$true] %s20
      %23 = dma.hbm_to_vmem [thread:$0]  %s0, 128, %s21, [#allocation3]
    $region5: #{tpu_custom_call.1} parent=1 // pred_fallthru
      _
    // Predicated region
    $region6: #{tpu_custom_call.1} parent=1 // pred_check
      _
    $region7: #{tpu_custom_call.1} parent=1 // pred_check_branch
      %25 = sbr.rel (0) target = $region9
    $region8: #{tpu_custom_call.1} parent=1 // pred_region
      %s27 = ssub.s32 256, 256
      %28 = vsyncadd [#allocation6], %s27
      %s29 = sshll.u32 [#allocation5], 4
      %s30 = int_to_ptr.vmem [resolvable:$true] %s29
      %35 = dma.hbm_to_vmem [thread:$0]  %s1, 256, %s30, [#allocation6], 64, 64, 4
    $region9: #{tpu_custom_call.1} parent=1 // pred_fallthru
      _
    // Predicated region
    $region10: #{tpu_custom_call.1} parent=1 // pred_check
      _
    $region11: #{tpu_custom_call.1} parent=1 // pred_check_branch
      %37 = sbr.rel (0) target = $region13
    $region12: #{tpu_custom_call.1} parent=1 // pred_region
      %s39 = ssub.s32 1024, 1024
      %40 = vsyncadd [#allocation6], %s39
      %s41 = sshll.u32 [#allocation7], 4
      %s42 = int_to_ptr.vmem [resolvable:$true] %s41
      %47 = dma.hbm_to_vmem [thread:$0]  %s2, 1024, %s42, [#allocation6], 64, 64, 4
    $region13: #{tpu_custom_call.1} parent=1 // pred_fallthru
      _
    // Predicated region
    $region14: #{tpu_custom_call.1} parent=1 // pred_check
      _
    $region15: #{tpu_custom_call.1} parent=1 // pred_check_branch
      %49 = sbr.rel (0) target = $region17
    $region16: #{tpu_custom_call.1} parent=1 // pred_region
      %s51 = ssub.s32 1024, 1024
      %52 = vsyncadd [#allocation9], %s51
      %s53 = sshll.u32 [#allocation8], 4
      %s54 = int_to_ptr.vmem [resolvable:$true] %s53
      %59 = dma.hbm_to_vmem [thread:$0]  %s3, 1024, %s54, [#allocation9], 64, 64, 4
    $region17: #{tpu_custom_call.1} parent=1 // pred_fallthru
      _
    // Predicated region
    $region18: #{tpu_custom_call.1} parent=1 // pred_check
      _
    $region19: #{tpu_custom_call.1} parent=1 // pred_check_branch
      %61 = sbr.rel (0) target = $region21
    $region20: #{tpu_custom_call.1} parent=1 // pred_region
      _
    $region21: #{tpu_custom_call.1} parent=1 // pred_fallthru
      _
    // Predicated region
    $region22: #{tpu_custom_call.1} parent=1 // pred_check
      _
    $region23: #{tpu_custom_call.1} parent=1 // pred_check_branch
      %63 = sbr.rel (0) target = $region25
    $region24: #{tpu_custom_call.1} parent=1 // pred_region
      %64 = dma.done [#allocation3], 128
    $region25: #{tpu_custom_call.1} parent=1 // pred_fallthru
      _
    // Predicated region
    $region26: #{tpu_custom_call.1} parent=1 // pred_check
      _
    $region27: #{tpu_custom_call.1} parent=1 // pred_check_branch
      %66 = sbr.rel (0) target = $region29
    $region28: #{tpu_custom_call.1} parent=1 // pred_region
      %67 = dma.done [#allocation6], 256
    $region29: #{tpu_custom_call.1} parent=1 // pred_fallthru
      _
    // Predicated region
    $region30: #{tpu_custom_call.1} parent=1 // pred_check
      _
    $region31: #{tpu_custom_call.1} parent=1 // pred_check_branch
      %69 = sbr.rel (0) target = $region33
    $region32: #{tpu_custom_call.1} parent=1 // pred_region
      %70 = dma.done [#allocation6], 1024
    $region33: #{tpu_custom_call.1} parent=1 // pred_fallthru
      _
    // Predicated region
    $region34: #{tpu_custom_call.1} parent=1 // pred_check
      _
    $region35: #{tpu_custom_call.1} parent=1 // pred_check_branch
      %72 = sbr.rel (0) target = $region37
    $region36: #{tpu_custom_call.1} parent=1 // pred_region
      %73 = dma.done [#allocation9], 1024
    $region37: #{tpu_custom_call.1} parent=1 // pred_fallthru
      _
    %v75 = vld [vmem:[#allocation2] sm:$0xff]
    %v76 = vld [vmem:[#allocation5] sm:$0xf]
    %v77 = vld [vmem:[#allocation5 + $0x4] sm:$0xf]
    %v78 = vld [vmem:[#allocation5 + $0x8] sm:$0xf]
    %v79 = vld [vmem:[#allocation5 + $0xc] sm:$0xf]
    %v80 = vld [vmem:[%s4] sm:$0x1]
    %v81 = vpack.c.bf16 %v75, %v75
    %v82 = vlaneseq
    %v83 = vshrl.u32 %v82, 7
    %v84 = vsub.s32 0, %v83
    %v85 = vrot.slane %v80, %v84
    %v90 = vunpack.c.l.b16 %v76
    %v91 = vunpack.c.l.b16 %v77
    %v92 = vunpack.c.l.b16 %v78
    %v93 = vunpack.c.l.b16 %v79
    %v94 = vpack.c.b16 %v91, %v90
    %v95 = vpack.c.b16 %v93, %v92
    %vm98 = vcmask 261120
    %v100 = vsel %vm98, %v81, 0
    %102 = vmatprep.subr.bf16.mxu0 0
    %103 = vmatpush1.bf16.msra.mxu0 %v94
    %104 = vmatprep.subr.bf16.mxu0 0
    %105 = vmatpush1.bf16.msra.mxu0 %v95
    %106 = vmatprep.subr.bf16.mxu0 0
    %107 = vmatpush1.bf16.msra.mxu0 0
    %108 = vmatprep.subr.bf16.mxu0 0
    %109 = vmatpush1.bf16.msra.mxu0 0
    %110 = vmatprep.subr.bf16.mxu0 0
    %111 = vmatpush1.bf16.msra.mxu0 0
    %112 = vmatprep.subr.bf16.mxu0 0
    %113 = vmatpush1.bf16.msra.mxu0 0
    %114 = vmatprep.subr.bf16.mxu0 0
    %115 = vmatpush1.bf16.msra.mxu0 0
    %116 = vmatprep.subr.bf16.mxu0 0
    %117 = vmatpush1.bf16.msra.mxu0 0
    %118 = vmatprep.subr.bf16.mxu0 0
    %119 = vmatpush1.bf16.msra.mxu0 0
    %120 = vmatprep.subr.bf16.mxu0 0
    %121 = vmatpush1.bf16.msra.mxu0 0
    %122 = vmatprep.subr.bf16.mxu0 0
    %123 = vmatpush1.bf16.msra.mxu0 0
    %124 = vmatprep.subr.bf16.mxu0 0
    %125 = vmatpush1.bf16.msra.mxu0 0
    %126 = vmatprep.subr.bf16.mxu0 0
    %127 = vmatpush1.bf16.msra.mxu0 0
    %128 = vmatprep.subr.bf16.mxu0 0
    %129 = vmatpush1.bf16.msra.mxu0 0
    %130 = vmatprep.subr.bf16.mxu0 0
    %131 = vmatpush1.bf16.msra.mxu0 0
    %132 = vmatprep.subr.bf16.mxu0 0
    %133 = vmatpush1.bf16.msra.mxu0 0
    %134 = vmatprep.mubr.bf16.mxu0 0
    %135 = vmatmul.mubr.bf16.gmra.mrb[0].mxu0 %v100
    %v136 = vpop.f32.mrb[0].mxu0
    %v137 = vadd.f32 %v85, %v136
    %v138 = vpop.f32.mrb[0].mxu0
    %v139 = vpop.f32.mrb[0].mxu0
    %v140 = vpop.f32.mrb[0].mxu0
    %141 = vdwg.mxu0
    %v142 = vmax.f32 %v137, 0.0
    %v143 = vld [vmem:[#allocation7] sm:$0xf]
    %v144 = vld [vmem:[#allocation7 + $0x4] sm:$0xf]
    %v145 = vld [vmem:[#allocation7 + $0x8] sm:$0xf]
    %v146 = vld [vmem:[#allocation7 + $0xc] sm:$0xf]
    %v147 = vld [vmem:[#allocation7 + $0x10] sm:$0xf]
    %v148 = vld [vmem:[#allocation7 + $0x14] sm:$0xf]
    %v149 = vld [vmem:[#allocation7 + $0x18] sm:$0xf]
    %v150 = vld [vmem:[#allocation7 + $0x1c] sm:$0xf]
    %v151 = vld [vmem:[#allocation7 + $0x20] sm:$0xf]
    %v152 = vld [vmem:[#allocation7 + $0x24] sm:$0xf]
    %v153 = vld [vmem:[#allocation7 + $0x28] sm:$0xf]
    %v154 = vld [vmem:[#allocation7 + $0x2c] sm:$0xf]
    %v155 = vld [vmem:[#allocation7 + $0x30] sm:$0xf]
    %v156 = vld [vmem:[#allocation7 + $0x34] sm:$0xf]
    %v157 = vld [vmem:[#allocation7 + $0x38] sm:$0xf]
    %v158 = vld [vmem:[#allocation7 + $0x3c] sm:$0xf]
    %v159 = vld [vmem:[%s4 + $0x1] sm:$0x1]
    %v160 = vpack.c.bf16 %v142, %v142
    %v161 = vlaneseq
    %v162 = vshrl.u32 %v161, 7
    %v163 = vsub.s32 0, %v162
    %v164 = vrot.slane %v159, %v163
    %v181 = vunpack.c.l.b16 %v143
    %v182 = vunpack.c.l.b16 %v144
    %v183 = vunpack.c.l.b16 %v145
    %v184 = vunpack.c.l.b16 %v146
    %v185 = vunpack.c.l.b16 %v147
    %v186 = vunpack.c.l.b16 %v148
    %v187 = vunpack.c.l.b16 %v149
    %v188 = vunpack.c.l.b16 %v150
    %v189 = vunpack.c.l.b16 %v151
    %v190 = vunpack.c.l.b16 %v152
    %v191 = vunpack.c.l.b16 %v153
    %v192 = vunpack.c.l.b16 %v154
    %v193 = vunpack.c.l.b16 %v155
    %v194 = vunpack.c.l.b16 %v156
    %v195 = vunpack.c.l.b16 %v157
    %v196 = vunpack.c.l.b16 %v158
    %v197 = vpack.c.b16 %v182, %v181
    %v198 = vpack.c.b16 %v184, %v183
    %v199 = vpack.c.b16 %v186, %v185
    %v200 = vpack.c.b16 %v188, %v187
    %v201 = vpack.c.b16 %v190, %v189
    %v202 = vpack.c.b16 %v192, %v191
    %v203 = vpack.c.b16 %v194, %v193
    %v204 = vpack.c.b16 %v196, %v195
    %213 = vmatprep.subr.bf16.mxu0 0
    %214 = vmatpush1.bf16.msra.mxu0 %v197
    %215 = vmatprep.subr.bf16.mxu0 0
    %216 = vmatpush1.bf16.msra.mxu0 %v198
    %217 = vmatprep.subr.bf16.mxu0 0
    %218 = vmatpush1.bf16.msra.mxu0 %v199
    %219 = vmatprep.subr.bf16.mxu0 0
    %220 = vmatpush1.bf16.msra.mxu0 %v200
    %221 = vmatprep.subr.bf16.mxu0 0
    %222 = vmatpush1.bf16.msra.mxu0 %v201
    %223 = vmatprep.subr.bf16.mxu0 0
    %224 = vmatpush1.bf16.msra.mxu0 %v202
    %225 = vmatprep.subr.bf16.mxu0 0
    %226 = vmatpush1.bf16.msra.mxu0 %v203
    %227 = vmatprep.subr.bf16.mxu0 0
    %228 = vmatpush1.bf16.msra.mxu0 %v204
    %229 = vmatprep.subr.bf16.mxu0 0
    %230 = vmatpush1.bf16.msra.mxu0 0
    %231 = vmatprep.subr.bf16.mxu0 0
    %232 = vmatpush1.bf16.msra.mxu0 0
    %233 = vmatprep.subr.bf16.mxu0 0
    %234 = vmatpush1.bf16.msra.mxu0 0
    %235 = vmatprep.subr.bf16.mxu0 0
    %236 = vmatpush1.bf16.msra.mxu0 0
    %237 = vmatprep.subr.bf16.mxu0 0
    %238 = vmatpush1.bf16.msra.mxu0 0
    %239 = vmatprep.subr.bf16.mxu0 0
    %240 = vmatpush1.bf16.msra.mxu0 0
    %241 = vmatprep.subr.bf16.mxu0 0
    %242 = vmatpush1.bf16.msra.mxu0 0
    %243 = vmatprep.subr.bf16.mxu0 0
    %244 = vmatpush1.bf16.msra.mxu0 0
    %245 = vmatprep.mubr.bf16.mxu0 0
    %246 = vmatmul.mubr.bf16.gmra.mrb[0].mxu0 %v160
    %v247 = vpop.f32.mrb[0].mxu0
    %v248 = vadd.f32 %v164, %v247
    %v249 = vpop.f32.mrb[0].mxu0
    %v250 = vpop.f32.mrb[0].mxu0
    %v251 = vpop.f32.mrb[0].mxu0
    %252 = vdwg.mxu0
    %v253 = vmax.f32 %v248, 0.0
    %v254 = vld [vmem:[#allocation8] sm:$0xf]
    %v255 = vld [vmem:[#allocation8 + $0x4] sm:$0xf]
    %v256 = vld [vmem:[#allocation8 + $0x8] sm:$0xf]
    %v257 = vld [vmem:[#allocation8 + $0xc] sm:$0xf]
    %v258 = vld [vmem:[#allocation8 + $0x10] sm:$0xf]
    %v259 = vld [vmem:[#allocation8 + $0x14] sm:$0xf]
    %v260 = vld [vmem:[#allocation8 + $0x18] sm:$0xf]
    %v261 = vld [vmem:[#allocation8 + $0x1c] sm:$0xf]
    %v262 = vld [vmem:[#allocation8 + $0x20] sm:$0xf]
    %v263 = vld [vmem:[#allocation8 + $0x24] sm:$0xf]
    %v264 = vld [vmem:[#allocation8 + $0x28] sm:$0xf]
    %v265 = vld [vmem:[#allocation8 + $0x2c] sm:$0xf]
    %v266 = vld [vmem:[#allocation8 + $0x30] sm:$0xf]
    %v267 = vld [vmem:[#allocation8 + $0x34] sm:$0xf]
    %v268 = vld [vmem:[#allocation8 + $0x38] sm:$0xf]
    %v269 = vld [vmem:[#allocation8 + $0x3c] sm:$0xf]
    %v270 = vld [vmem:[%s4 + $0x2] sm:$0x1]
    %v271 = vpack.c.bf16 %v253, %v253
    %v272 = vlaneseq
    %v273 = vshrl.u32 %v272, 7
    %v274 = vsub.s32 0, %v273
    %v275 = vrot.slane %v270, %v274
    %v292 = vunpack.c.l.b16 %v254
    %v293 = vunpack.c.l.b16 %v255
    %v294 = vunpack.c.l.b16 %v256
    %v295 = vunpack.c.l.b16 %v257
    %v296 = vunpack.c.l.b16 %v258
    %v297 = vunpack.c.l.b16 %v259
    %v298 = vunpack.c.l.b16 %v260
    %v299 = vunpack.c.l.b16 %v261
    %v300 = vunpack.c.l.b16 %v262
    %v301 = vunpack.c.l.b16 %v263
    %v302 = vunpack.c.l.b16 %v264
    %v303 = vunpack.c.l.b16 %v265
    %v304 = vunpack.c.l.b16 %v266
    %v305 = vunpack.c.l.b16 %v267
    %v306 = vunpack.c.l.b16 %v268
    %v307 = vunpack.c.l.b16 %v269
    %v308 = vpack.c.b16 %v293, %v292
    %v309 = vpack.c.b16 %v295, %v294
    %v310 = vpack.c.b16 %v297, %v296
    %v311 = vpack.c.b16 %v299, %v298
    %v312 = vpack.c.b16 %v301, %v300
    %v313 = vpack.c.b16 %v303, %v302
    %v314 = vpack.c.b16 %v305, %v304
    %v315 = vpack.c.b16 %v307, %v306
    %324 = vmatprep.subr.bf16.mxu0 0
    %325 = vmatpush1.bf16.msra.mxu0 %v308
    %326 = vmatprep.subr.bf16.mxu0 0
    %327 = vmatpush1.bf16.msra.mxu0 %v309
    %328 = vmatprep.subr.bf16.mxu0 0
    %329 = vmatpush1.bf16.msra.mxu0 %v310
    %330 = vmatprep.subr.bf16.mxu0 0
    %331 = vmatpush1.bf16.msra.mxu0 %v311
    %332 = vmatprep.subr.bf16.mxu0 0
    %333 = vmatpush1.bf16.msra.mxu0 %v312
    %334 = vmatprep.subr.bf16.mxu0 0
    %335 = vmatpush1.bf16.msra.mxu0 %v313
    %336 = vmatprep.subr.bf16.mxu0 0
    %337 = vmatpush1.bf16.msra.mxu0 %v314
    %338 = vmatprep.subr.bf16.mxu0 0
    %339 = vmatpush1.bf16.msra.mxu0 %v315
    %340 = vmatprep.subr.bf16.mxu0 0
    %341 = vmatpush1.bf16.msra.mxu0 0
    %342 = vmatprep.subr.bf16.mxu0 0
    %343 = vmatpush1.bf16.msra.mxu0 0
    %344 = vmatprep.subr.bf16.mxu0 0
    %345 = vmatpush1.bf16.msra.mxu0 0
    %346 = vmatprep.subr.bf16.mxu0 0
    %347 = vmatpush1.bf16.msra.mxu0 0
    %348 = vmatprep.subr.bf16.mxu0 0
    %349 = vmatpush1.bf16.msra.mxu0 0
    %350 = vmatprep.subr.bf16.mxu0 0
    %351 = vmatpush1.bf16.msra.mxu0 0
    %352 = vmatprep.subr.bf16.mxu0 0
    %353 = vmatpush1.bf16.msra.mxu0 0
    %354 = vmatprep.subr.bf16.mxu0 0
    %355 = vmatpush1.bf16.msra.mxu0 0
    %356 = vmatprep.mubr.bf16.mxu0 0
    %357 = vmatmul.mubr.bf16.gmra.mrb[0].mxu0 %v271
    %v358 = vpop.f32.mrb[0].mxu0
    %v359 = vadd.f32 %v275, %v358
    %v360 = vpop.f32.mrb[0].mxu0
    %v361 = vpop.f32.mrb[0].mxu0
    %v362 = vpop.f32.mrb[0].mxu0
    %363 = vdwg.mxu0
    %364 = vst [vmem:[#allocation10] sm:$0xff] %v359
    // Predicated region
    $region38: #{tpu_custom_call.1} parent=1 // pred_check
      _
    $region39: #{tpu_custom_call.1} parent=1 // pred_check_branch
      %366 = sbr.rel (0) target = $region41
    $region40: #{tpu_custom_call.1} parent=1 // pred_region
      %s368 = ssub.s32 128, 128
      %369 = vsyncadd [#allocation4], %s368
      %s371 = sshll.u32 [#allocation10], 4
      %s372 = int_to_ptr.vmem [resolvable:$true] %s371
      %374 = dma.vmem_to_hbm [thread:$0]  %s372, 128, %s5, [#allocation4]
    $region41: #{tpu_custom_call.1} parent=1 // pred_fallthru
      _
    // Predicated region
    $region42: #{tpu_custom_call.1} parent=1 // pred_check
      _
    $region43: #{tpu_custom_call.1} parent=1 // pred_check_branch
      %376 = sbr.rel (0) target = $region45
    $region44: #{tpu_custom_call.1} parent=1 // pred_region
      %377 = dma.done [#allocation4], 128
    $region45: #{tpu_custom_call.1} parent=1 // pred_fallthru
      _
    %378 = vsyncpa [#allocation3], 1
    %379 = vsyncpa [#allocation6], 1
    %380 = vsyncpa [#allocation9], 1
    %381 = vsyncpa [#allocation4], 1

</llo_original>
